<compile_context>
chip_gen: v5e
topology: v5e:2x2
jax: 0.10.0
libtpu: 0.0.40
codegen_flags: <defaults>
</compile_context>

<pallas_src>
import jax
import jax.numpy as jnp
from jax.experimental import pallas as pl
from jax.experimental.pallas import tpu as pltpu

EPS = 1e-5                    # PyTorch BatchNorm2d default
SMALL_CIN_FULL_FOLD = 32      # Cin <= this -> full 9-tap im2col fold


def _pick_vmem_limit():
    try:
        kind = jax.devices()[0].device_kind.lower()
    except Exception:
        return 32 * 1024 * 1024
    if "v7" in kind:          # v7x: 64 MiB physical VMEM -> keep 32 MiB scoped
        return 32 * 1024 * 1024
    return 64 * 1024 * 1024   # v5e/v5p/v6e: 128 MiB physical


def _pick_row_tile(H, W, N, target_rows=1024):
    """Tile height TH for pass 1. TH divides H and either TH == H (block equals the
    full dim) or TH*W is sublane-aligned. Prefer the largest tile that fits
    `target_rows` output pixels, and >= 2 total grid steps (v7x dual TensorCore)."""
    valid = [th for th in range(1, H + 1)
             if H % th == 0 and (th == H or (th * W) % 8 == 0)]
    fitting = [th for th in valid if th * W <= target_rows]
    th = max(fitting) if fitting else min(valid)
    # TODO(synk): if even TH=1 exceeds target_rows (very wide images), tile W too.
    if N * (H // th) < 2:
        proper = [t for t in fitting if t < H]
        if proper:
            th = max(proper)
    return th


def _pick_pass2_rows(total, target=4096):
    """Row block for the elementwise BN+ReLU pass: largest sublane-aligned divisor
    of `total` within `target`, preferring >= 2 grid steps."""
    divs = [r for r in range(1, total + 1)
            if total % r == 0 and (r % 8 == 0 or r == total)]
    pref = [r for r in divs if r <= target and r < total]
    if pref:
        return max(pref)
    small = [r for r in divs if r <= target]
    return max(small) if small else total


# ---------------------------------------------------------------------------
# Pass 1: 3x3 conv as folded-K MXU matmuls + per-tile BN partial statistics.
# ---------------------------------------------------------------------------
def _make_conv_stats_kernel(kh_taps, th, w_img):
    def kernel(x_ref, w_ref, y_ref, s_ref, ss_ref):
        k = w_ref.shape[1]
        cout = w_ref.shape[2]
        if kh_taps == 1:
            # x_ref: (1, TM, 9*Cin) exact tile -> one K = 9*Cin matmul.
            acc = jnp.dot(x_ref[0], w_ref[0], preferred_element_type=jnp.float32)
        else:
            # x_ref: (1, H+2, W, 3*Cin) whole kw-folded padded image; take the
            # TH-row window for each kh tap with pl.ds (3 matmuls, K = 3*Cin).
            row0 = pl.program_id(1) * th
            acc = jnp.zeros((th * w_img, cout), jnp.float32)
            for kh in range(kh_taps):
                rows = x_ref[0, pl.ds(row0 + kh, th)]          # (TH, W, 3*Cin)
                acc = acc + jnp.dot(rows.reshape(th * w_img, k), w_ref[kh],
                                    preferred_element_type=jnp.float32)

        y_bf = acc.astype(y_ref.dtype)
        y_ref[0] = y_bf
        # Partial BN stats from the *stored* (rounded) values so pass 2
        # normalizes with exactly matching statistics.
        yr = y_bf.astype(jnp.float32)
        s_ref[0, 0] = jnp.sum(yr, axis=0, keepdims=True)
        ss_ref[0, 0] = jnp.sum(yr * yr, axis=0, keepdims=True)

    return kernel


# ---------------------------------------------------------------------------
# Pass 2: per-channel scale/shift + ReLU on big independent row blocks.
# ---------------------------------------------------------------------------
def _bn_relu_kernel(y_ref, scale_ref, shift_ref, o_ref):
    y = y_ref[...].astype(jnp.float32)
    o_ref[...] = jnp.maximum(y * scale_ref[...] + shift_ref[...], 0.0)


# ---------------------------------------------------------------------------
# Wrapper
# ---------------------------------------------------------------------------
def conv_unit_forward(x_nchw, w_oihw, bias, gamma, beta, *, target_rows=1024):
    """Conv2d(3x3, s=1, p=1, bias) + BatchNorm2d (train-mode batch stats) + ReLU.

    The conv bias is intentionally dropped: a per-channel additive bias before
    train-mode BatchNorm is exactly cancelled by the mean subtraction, so the
    output is mathematically identical."""
    del bias  # cancelled by BN mean subtraction (no-op on the output)

    N, Cin, H, W = x_nchw.shape
    Cout = w_oihw.shape[0]
    TH = _pick_row_tile(H, W, N, target_rows)
    T = H // TH
    TM = TH * W
    HW = H * W
    vmem_limit = _pick_vmem_limit()

    x_nhwc = jnp.transpose(x_nchw, (0, 2, 3, 1)).astype(jnp.bfloat16)
    xp = jnp.pad(x_nhwc, ((0, 0), (1, 1), (1, 1), (0, 0)))          # (N,H+2,W+2,Cin)
    w_t = jnp.transpose(w_oihw, (2, 3, 1, 0)).astype(jnp.bfloat16)  # (3,3,Cin,Cout)

    full_fold = Cin <= SMALL_CIN_FULL_FOLD
    if full_fold:
        # Full im2col fold (cheap at small Cin): (N, H*W, 9*Cin) bf16.
        x_f = jnp.concatenate(
            [xp[:, kh:kh + H, kw:kw + W, :] for kh in range(3) for kw in range(3)],
            axis=-1).reshape(N, HW, 9 * Cin)
        w_f = w_t.reshape(1, 9 * Cin, Cout)
        kh_taps = 1
        x_spec = pl.BlockSpec((1, TM, 9 * Cin), lambda n, i: (n, i, 0))
        w_spec = pl.BlockSpec((1, 9 * Cin, Cout), lambda n, i: (0, 0, 0))
    else:
        # kw-fold only: (N, H+2, W, 3*Cin) bf16 (~1.5x the fp32 activation bytes).
        x_f = jnp.concatenate([xp[:, :, kw:kw + W, :] for kw in range(3)], axis=-1)
        w_f = w_t.reshape(3, 3 * Cin, Cout)
        kh_taps = 3
        # Whole kw-folded padded image resident per batch element; with a constant
        # row-tile index it is DMA'd once per image (no halo overfetch).
        # TODO(synk): for very large H*W*Cin, switch to a (TH+2)-row halo DMA
        # (memory_space=pl.ANY + make_async_copy) instead of full-image residency.
        x_spec = pl.BlockSpec((1, H + 2, W, 3 * Cin), lambda n, i: (n, 0, 0, 0))
        w_spec = pl.BlockSpec((3, 3 * Cin, Cout), lambda n, i: (0, 0, 0))

    # -- Pass 1: conv + per-tile BN partial stats -----------------------------
    conv_out, psum, psumsq = pl.pallas_call(
        _make_conv_stats_kernel(kh_taps, TH, W),
        out_shape=(
            jax.ShapeDtypeStruct((N, HW, Cout), jnp.bfloat16),
            jax.ShapeDtypeStruct((N, T, 1, Cout), jnp.float32),
            jax.ShapeDtypeStruct((N, T, 1, Cout), jnp.float32),
        ),
        grid_spec=pltpu.PrefetchScalarGridSpec(
            num_scalar_prefetch=0,
            grid=(N, T),
            in_specs=[x_spec, w_spec],
            out_specs=[
                pl.BlockSpec((1, TM, Cout), lambda n, i: (n, i, 0)),
                pl.BlockSpec((1, 1, 1, Cout), lambda n, i: (n, i, 0, 0)),
                pl.BlockSpec((1, 1, 1, Cout), lambda n, i: (n, i, 0, 0)),
            ],
        ),
        compiler_params=pltpu.CompilerParams(
            dimension_semantics=("parallel", "parallel"),
            vmem_limit_bytes=vmem_limit),
    )(x_f, w_f)

    # -- Finalize per-channel BN stats (tiny (Cout,) glue math in plain JAX) --
    count = jnp.float32(N * HW)
    sum_c = jnp.sum(psum[:, :, 0, :], axis=(0, 1))
    sumsq_c = jnp.sum(psumsq[:, :, 0, :], axis=(0, 1))
    mean = sum_c / count
    var = jnp.maximum(sumsq_c / count - mean * mean, 0.0)    # biased variance
    inv_std = jax.lax.rsqrt(var + EPS)
    scale = (gamma.astype(jnp.float32) * inv_std).reshape(1, Cout)
    shift = (beta.astype(jnp.float32) - mean * scale[0]).reshape(1, Cout)

    # -- Pass 2: normalize + ReLU, large row blocks independent of pass 1 -----
    total = N * HW
    R2 = _pick_pass2_rows(total)
    out_flat = pl.pallas_call(
        _bn_relu_kernel,
        out_shape=jax.ShapeDtypeStruct((total, Cout), jnp.float32),
        grid_spec=pltpu.PrefetchScalarGridSpec(
            num_scalar_prefetch=0,
            grid=(total // R2,),
            in_specs=[
                pl.BlockSpec((R2, Cout), lambda i: (i, 0)),
                pl.BlockSpec((1, Cout), lambda i: (0, 0)),
                pl.BlockSpec((1, Cout), lambda i: (0, 0)),
            ],
            out_specs=pl.BlockSpec((R2, Cout), lambda i: (i, 0)),
        ),
        compiler_params=pltpu.CompilerParams(
            dimension_semantics=("parallel",),
            vmem_limit_bytes=vmem_limit),
    )(conv_out.reshape(total, Cout), scale, shift)

    out = out_flat.reshape(N, H, W, Cout)
    # NCHW to match the PyTorch module; an NHWC consumer could skip this transpose.
    return jnp.transpose(out, (0, 3, 1, 2))


# ---------------------------------------------------------------------------
# Pure-JAX reference (PyTorch semantics) for sanity checking
# ---------------------------------------------------------------------------
def conv_unit_reference(x_nchw, w_oihw, bias, gamma, beta):
    y = jax.lax.conv_general_dilated(
        x_nchw, w_oihw, window_strides=(1, 1), padding=((1, 1), (1, 1)),
        dimension_numbers=("NCHW", "OIHW", "NCHW"))
    y = y + bias[None, :, None, None]
    mean = jnp.mean(y, axis=(0, 2, 3), keepdims=True)
    var = jnp.mean((y - mean) ** 2, axis=(0, 2, 3), keepdims=True)  # biased
    y = (y - mean) * jax.lax.rsqrt(var + EPS)
    y = y * gamma[None, :, None, None] + beta[None, :, None, None]
    return jnp.maximum(y, 0.0)


if __name__ == "__main__":
    def run_case(case, N, Cin, Cout, H, W):
        key = jax.random.fold_in(jax.random.PRNGKey(0), case)
        k1, k2, k3, k4, k5 = jax.random.split(key, 5)
        x = jax.random.normal(k1, (N, Cin, H, W), jnp.float32)
        w = 0.1 * jax.random.normal(k2, (Cout, Cin, 3, 3), jnp.float32)   # OIHW
        b = 0.1 * jax.random.normal(k3, (Cout,), jnp.float32)
        gamma = 1.0 + 0.1 * jax.random.normal(k4, (Cout,), jnp.float32)   # BN weight
        beta = 0.1 * jax.random.normal(k5, (Cout,), jnp.float32)          # BN bias

        out = jax.block_until_ready(conv_unit_forward(x, w, b, gamma, beta))
        ref = jax.block_until_ready(conv_unit_reference(x, w, b, gamma, beta))
        assert out.shape == (N, Cout, H, W), out.shape
        err = float(jnp.max(jnp.abs(out - ref)))
        assert jnp.allclose(out, ref, atol=3e-2, rtol=3e-2), err

    run_case(0, N=2, Cin=4, Cout=8, H=16, W=16)    # small-Cin full im2col fold path
    run_case(1, N=1, Cin=48, Cout=32, H=8, W=8)    # kw-fold + in-kernel kh pl.ds path
    print("KERNEL_OK")
</pallas_src>

<mosaic_0001>
module attributes {stable_mosaic.version = 11 : i64} {
  func.func @kernel(%arg0: i32, %arg1: i32, %arg2: memref<1x256x36xbf16, #tpu.memory_space<vmem>>, %arg3: memref<1x36x8xbf16, #tpu.memory_space<vmem>>, %arg4: memref<1x256x8xbf16, #tpu.memory_space<vmem>>, %arg5: memref<1x1x1x8xf32, #tpu.memory_space<vmem>>, %arg6: memref<1x1x1x8xf32, #tpu.memory_space<vmem>>) attributes {dimension_semantics = [#tpu.dimension_semantics<parallel>, #tpu.dimension_semantics<parallel>], iteration_bounds = array<i64: 2, 1>, scalar_prefetch = 0 : i64, scratch_operands = 0 : i64, tpu.core_type = #tpu.core_type<tc>, window_params = [{transform_indices = @transform_0, window_bounds = array<i64: 1, 256, 36>}, {pipeline_mode = #tpu.pipeline_mode<synchronous>, transform_indices = @transform_1, window_bounds = array<i64: 1, 36, 8>}, {transform_indices = @transform_2, window_bounds = array<i64: 1, 256, 8>}, {transform_indices = @transform_3, window_bounds = array<i64: 1, 1, 1, 8>}, {transform_indices = @transform_4, window_bounds = array<i64: 1, 1, 1, 8>}]} {
    %c0 = arith.constant 0 : index
    %c0_0 = arith.constant 0 : index
    %c0_1 = arith.constant 0 : index
    %0 = vector.load %arg2[%c0, %c0_0, %c0_1] : memref<1x256x36xbf16, #tpu.memory_space<vmem>>, vector<1x256x36xbf16>
    %1 = vector.shape_cast %0 : vector<1x256x36xbf16> to vector<256x36xbf16>
    %c0_2 = arith.constant 0 : index
    %c0_3 = arith.constant 0 : index
    %c0_4 = arith.constant 0 : index
    %2 = vector.load %arg3[%c0_2, %c0_3, %c0_4] : memref<1x36x8xbf16, #tpu.memory_space<vmem>>, vector<1x36x8xbf16>
    %3 = vector.shape_cast %2 : vector<1x36x8xbf16> to vector<36x8xbf16>
    %cst = arith.constant dense<0.000000e+00> : vector<256x8xf32>
    %4 = tpu.matmul %1, %3, %cst {dimension_numbers = #tpu.dot_dimension_numbers<[1], [0], [0], [1], [0, 0, 1, 1], [], []>} : vector<256x36xbf16>, vector<36x8xbf16>, vector<256x8xf32> -> vector<256x8xf32>
    %5 = arith.truncf %4 : vector<256x8xf32> to vector<256x8xbf16>
    %c0_5 = arith.constant 0 : index
    %c0_6 = arith.constant 0 : index
    %c0_7 = arith.constant 0 : index
    %6 = vector.load %arg4[%c0_5, %c0_6, %c0_7] : memref<1x256x8xbf16, #tpu.memory_space<vmem>>, vector<1x256x8xbf16>
    %7 = vector.shape_cast %6 : vector<1x256x8xbf16> to vector<256x8xbf16>
    %8 = vector.shape_cast %5 : vector<256x8xbf16> to vector<1x256x8xbf16>
    tpu.vector_store %arg4[%c0_5, %c0_6, %c0_7], %8 {strides = array<i32>} : memref<1x256x8xbf16, #tpu.memory_space<vmem>>, vector<1x256x8xbf16>,
    %9 = arith.extf %5 : vector<256x8xbf16> to vector<256x8xf32>
    %cst_8 = arith.constant dense<0.000000e+00> : vector<8xf32>
    %10 = vector.multi_reduction <add>, %9, %cst_8 [0] : vector<256x8xf32> to vector<8xf32>
    %11 = vector.shape_cast %10 : vector<8xf32> to vector<1x8xf32>
    %c0_9 = arith.constant 0 : index
    %c0_10 = arith.constant 0 : index
    %c0_11 = arith.constant 0 : index
    %c0_12 = arith.constant 0 : index
    %12 = vector.load %arg5[%c0_9, %c0_10, %c0_11, %c0_12] : memref<1x1x1x8xf32, #tpu.memory_space<vmem>>, vector<1x1x1x8xf32>
    %13 = vector.shape_cast %12 : vector<1x1x1x8xf32> to vector<1x8xf32>
    %14 = vector.shape_cast %11 : vector<1x8xf32> to vector<1x1x1x8xf32>
    tpu.vector_store %arg5[%c0_9, %c0_10, %c0_11, %c0_12], %14 {strides = array<i32>} : memref<1x1x1x8xf32, #tpu.memory_space<vmem>>, vector<1x1x1x8xf32>,
    %15 = arith.mulf %9, %9 : vector<256x8xf32>
    %cst_13 = arith.constant dense<0.000000e+00> : vector<8xf32>
    %16 = vector.multi_reduction <add>, %15, %cst_13 [0] : vector<256x8xf32> to vector<8xf32>
    %17 = vector.shape_cast %16 : vector<8xf32> to vector<1x8xf32>
    %c0_14 = arith.constant 0 : index
    %c0_15 = arith.constant 0 : index
    %c0_16 = arith.constant 0 : index
    %c0_17 = arith.constant 0 : index
    %18 = vector.load %arg6[%c0_14, %c0_15, %c0_16, %c0_17] : memref<1x1x1x8xf32, #tpu.memory_space<vmem>>, vector<1x1x1x8xf32>
    %19 = vector.shape_cast %18 : vector<1x1x1x8xf32> to vector<1x8xf32>
    %20 = vector.shape_cast %17 : vector<1x8xf32> to vector<1x1x1x8xf32>
    tpu.vector_store %arg6[%c0_14, %c0_15, %c0_16, %c0_17], %20 {strides = array<i32>} : memref<1x1x1x8xf32, #tpu.memory_space<vmem>>, vector<1x1x1x8xf32>,
    return
  }
  func.func @transform_0(%arg0: i32, %arg1: i32) -> (i32, i32, i32) {
    %c0_i32 = arith.constant 0 : i32
    %c0_i32_0 = arith.constant 0 : i32
    return %arg0, %arg1, %c0_i32 : i32, i32, i32
  }
  func.func @transform_1(%arg0: i32, %arg1: i32) -> (i32, i32, i32) {
    %c0_i32 = arith.constant 0 : i32
    %c0_i32_0 = arith.constant 0 : i32
    %c0_i32_1 = arith.constant 0 : i32
    %c0_i32_2 = arith.constant 0 : i32
    return %c0_i32, %c0_i32_0, %c0_i32_1 : i32, i32, i32
  }
  func.func @transform_2(%arg0: i32, %arg1: i32) -> (i32, i32, i32) {
    %c0_i32 = arith.constant 0 : i32
    %c0_i32_0 = arith.constant 0 : i32
    return %arg0, %arg1, %c0_i32 : i32, i32, i32
  }
  func.func @transform_3(%arg0: i32, %arg1: i32) -> (i32, i32, i32, i32) {
    %c0_i32 = arith.constant 0 : i32
    %c0_i32_0 = arith.constant 0 : i32
    %c0_i32_1 = arith.constant 0 : i32
    return %arg0, %arg1, %c0_i32, %c0_i32_0 : i32, i32, i32, i32
  }
  func.func @transform_4(%arg0: i32, %arg1: i32) -> (i32, i32, i32, i32) {
    %c0_i32 = arith.constant 0 : i32
    %c0_i32_0 = arith.constant 0 : i32
    %c0_i32_1 = arith.constant 0 : i32
    return %arg0, %arg1, %c0_i32, %c0_i32_0 : i32, i32, i32, i32
  }
}

</mosaic_0001>

<llo_original>
// kernel: tpu_custom_call.1
$region0: #{tpu_custom_call.1}
  #allocation0 [shape = 'u32[]', space=smem, size = 0x4, offset = 0x4, fixed_abs, tag = 'smem constant byte address 0x4 - core index']
  #allocation1 [shape = 'u32[72,128]{1,0:T(1,128)}', space=vmem, size = 0x9000, scoped, tag = 'internal scratch']
  %s0 = inlined_call_operand.vmem [shape: bf16[2,256,36], index: 0, kind: input, shape index: {}]
  %s1 = inlined_call_operand.vmem [shape: bf16[1,36,8], index: 1, kind: input, shape index: {}]
  %s2 = inlined_call_operand.vmem [shape: bf16[2,256,8], index: 2, kind: output, shape index: {0}]
  %s3 = inlined_call_operand.hbm [shape: f32[2,1,1,8], index: 3, kind: output, shape index: {1}]
  %s4 = inlined_call_operand.hbm [shape: f32[2,1,1,8], index: 4, kind: output, shape index: {2}]
  %5 = xla_tuple %s2, %s3, %s4
  %s6 = sld [smem:[#allocation0]]
  $region57: #{tpu_custom_call.1} parent=0
    _
  %s8 = ssub.s32 1, %s6
  %s9 = scalar_select 0, %s8, %s6
  $region1: #{tpu_custom_call.1} parent=0
    #allocation2 [shape = 'u8[1024]{0}', space=vmem, size = 0x400, scoped, tag = 'output window, operand 1']
    #allocation3 [shape = 's32[2]{0}', space=sflag, size = 0x8, scoped, tag = 'scoped memory for tpu_custom_call.1']
    #allocation4 [shape = 'u8[1024]{0}', space=vmem, size = 0x400, scoped, tag = 'output window, operand 2']
    #allocation5 [shape = 's32[2]{0}', space=sflag, size = 0x8, scoped, tag = 'scoped memory for tpu_custom_call.1']
    %10 = vsyncpa [#allocation3], 0
    %s11 = scalar_lea.sflag [#allocation3], 1
    %12 = vsyncpa %s11, 0
    %13 = vsyncpa [#allocation5], 0
    %s14 = scalar_lea.sflag [#allocation5], 1
    %15 = vsyncpa %s14, 0
    loop: start=0, step=1, limit=4
    $region2: #{tpu_custom_call.1} parent=1 // loop_pre_header
      _
    $region3: #{tpu_custom_call.1} parent=1 // loop_header
      %s17 = sphi 0, %s21
      %p18 = scmp.ge.s32.totalorder %s17, 4
      %s24 = sphi 0, %s36
      %s25 = sphi 0, %s32
      %s26 = sphi 0, %s24
      %s27 = sphi 0, %s25
      %s28 = sphi 0, %s26
      %s29 = sphi 0, %s27
      %s41 = sphi 0, %s43
      %s44 = sphi 0, %s41
      %s45 = sphi 0, %s44
      %s61 = sphi 0, %s45
      %s65 = sphi 0, %s65
      %s67 = sphi 0, %s65
      %s68 = sphi 0, %s67
      %s82 = sphi 0, %s68
      %s90 = sphi 0, %s92
      %s93 = sphi 0, %s90
      %s94 = sphi 0, %s93
      %s110 = sphi 0, %s94
      %s118 = sphi 0, %s120
      %s121 = sphi 0, %s118
      %s122 = sphi 0, %s121
      %s138 = sphi 0, %s122
      %s146 = sphi 0, %s148
      %s149 = sphi 0, %s146
      %s150 = sphi 0, %s149
      %s166 = sphi 0, %s150
    $region4: #{tpu_custom_call.1} parent=1 // loop_header_branch
      %20 = sbr.rel (%p18) target = $region8
    $region5: #{tpu_custom_call.1} parent=1 // loop_body
      %s22 = ssub.s32 %s17, 1
      %s23 = ssub.s32 %s17, 2
      %s30 = sadd.s32 1, %s25
      %p31 = scmp.ge.s32.totalorder %s30, 1
      %s32 = scalar_select %p31, 0, %s30
      %s33 = sadd.s32 1, %s24
      %s34 = scalar_select %p31, %s33, %s24
      %p35 = scmp.ge.s32.totalorder %s34, 2
      %s36 = scalar_select %p35, 0, %s34
      %s37 = ssub.s32 %s24, %s36
      %s38 = ssub.s32 %s25, %s32
      %s39 = sor.u32 %s37, %s38
      %p40 = scmp.eq.s32.totalorder %s39, 0
      %s42 = sadd.s32 %s41, 1
      %s43 = scalar_select %p40, %s41, %s42
      %p46 = pneg %p40
      %p47 = scmp.eq.s32.totalorder %s17, 1
      %p48 = por %p46, %p47
      %p49 = scmp.ne.s32.totalorder %s41, %s44
      %p50 = scmp.eq.s32.totalorder %s17, 0
      %p51 = por %p49, %p50
      %p52 = scmp.ne.s32.totalorder %s41, %s44
      %p53 = scmp.eq.s32.totalorder %s22, 1
      %p54 = por %p52, %p53
      %p55 = scmp.ne.s32.totalorder %s44, %s45
      %p56 = scmp.eq.s32.totalorder %s22, 0
      %p57 = por %p55, %p56
      %p58 = scmp.ne.s32.totalorder %s44, %s45
      %p59 = scmp.eq.s32.totalorder %s23, 1
      %p60 = por %p58, %p59
      %p62 = scmp.ne.s32.totalorder %s45, %s61
      %p63 = scmp.eq.s32.totalorder %s23, 0
      %p64 = por %p62, %p63
      %s66 = sadd.s32 %s65, 1
      %p69 = scmp.eq.s32.totalorder %s17, 1
      %p70 = scmp.ne.s32.totalorder %s65, %s67
      %p71 = scmp.eq.s32.totalorder %s17, 0
      %p72 = por %p70, %p71
      %p73 = scmp.ne.s32.totalorder %s65, %s67
      %p74 = scmp.eq.s32.totalorder %s22, 1
      %p75 = por %p73, %p74
      %p76 = scmp.ne.s32.totalorder %s67, %s68
      %p77 = scmp.eq.s32.totalorder %s22, 0
      %p78 = por %p76, %p77
      %p79 = scmp.ne.s32.totalorder %s67, %s68
      %p80 = scmp.eq.s32.totalorder %s23, 1
      %p81 = por %p79, %p80
      %p83 = scmp.ne.s32.totalorder %s68, %s82
      %p84 = scmp.eq.s32.totalorder %s23, 0
      %p85 = por %p83, %p84
      %s86 = ssub.s32 %s24, %s36
      %s87 = ssub.s32 %s25, %s32
      %s88 = sor.u32 %s86, %s87
      %p89 = scmp.eq.s32.totalorder %s88, 0
      %s91 = sadd.s32 %s90, 1
      %s92 = scalar_select %p89, %s90, %s91
      %p95 = pneg %p89
      %p96 = scmp.eq.s32.totalorder %s17, 1
      %p97 = por %p95, %p96
      %p98 = scmp.ne.s32.totalorder %s90, %s93
      %p99 = scmp.eq.s32.totalorder %s17, 0
      %p100 = por %p98, %p99
      %p101 = scmp.ne.s32.totalorder %s90, %s93
      %p102 = scmp.eq.s32.totalorder %s22, 1
      %p103 = por %p101, %p102
      %p104 = scmp.ne.s32.totalorder %s93, %s94
      %p105 = scmp.eq.s32.totalorder %s22, 0
      %p106 = por %p104, %p105
      %p107 = scmp.ne.s32.totalorder %s93, %s94
      %p108 = scmp.eq.s32.totalorder %s23, 1
      %p109 = por %p107, %p108
      %p111 = scmp.ne.s32.totalorder %s94, %s110
      %p112 = scmp.eq.s32.totalorder %s23, 0
      %p113 = por %p111, %p112
      %s114 = ssub.s32 %s24, %s36
      %s115 = ssub.s32 %s25, %s32
      %s116 = sor.u32 %s114, %s115
      %p117 = scmp.eq.s32.totalorder %s116, 0
      %s119 = sadd.s32 %s118, 1
      %s120 = scalar_select %p117, %s118, %s119
      %p123 = pneg %p117
      %p124 = scmp.eq.s32.totalorder %s17, 1
      %p125 = por %p123, %p124
      %p126 = scmp.ne.s32.totalorder %s118, %s121
      %p127 = scmp.eq.s32.totalorder %s17, 0
      %p128 = por %p126, %p127
      %p129 = scmp.ne.s32.totalorder %s118, %s121
      %p130 = scmp.eq.s32.totalorder %s22, 1
      %p131 = por %p129, %p130
      %p132 = scmp.ne.s32.totalorder %s121, %s122
      %p133 = scmp.eq.s32.totalorder %s22, 0
      %p134 = por %p132, %p133
      %p135 = scmp.ne.s32.totalorder %s121, %s122
      %p136 = scmp.eq.s32.totalorder %s23, 1
      %p137 = por %p135, %p136
      %p139 = scmp.ne.s32.totalorder %s122, %s138
      %p140 = scmp.eq.s32.totalorder %s23, 0
      %p141 = por %p139, %p140
      %s142 = ssub.s32 %s24, %s36
      %s143 = ssub.s32 %s25, %s32
      %s144 = sor.u32 %s142, %s143
      %p145 = scmp.eq.s32.totalorder %s144, 0
      %s147 = sadd.s32 %s146, 1
      %s148 = scalar_select %p145, %s146, %s147
      %p151 = pneg %p145
      %p152 = scmp.eq.s32.totalorder %s17, 1
      %p153 = por %p151, %p152
      %p154 = scmp.ne.s32.totalorder %s146, %s149
      %p155 = scmp.eq.s32.totalorder %s17, 0
      %p156 = por %p154, %p155
      %p157 = scmp.ne.s32.totalorder %s146, %s149
      %p158 = scmp.eq.s32.totalorder %s22, 1
      %p159 = por %p157, %p158
      %p160 = scmp.ne.s32.totalorder %s149, %s150
      %p161 = scmp.eq.s32.totalorder %s22, 0
      %p162 = por %p160, %p161
      %p163 = scmp.ne.s32.totalorder %s149, %s150
      %p164 = scmp.eq.s32.totalorder %s23, 1
      %p165 = por %p163, %p164
      %p167 = scmp.ne.s32.totalorder %s150, %s166
      %p168 = scmp.eq.s32.totalorder %s23, 0
      %p169 = por %p167, %p168
      %p170 = scmp.le.s32.totalorder 1, %s17
      %p171 = scmp.lt.s32.totalorder %s17, 3
      %p172 = pnand %p170, %p171
      %p173 = pneg %p172
      // Predicated region
      $region9: #{tpu_custom_call.1} parent=5 // pred_check
        _
      $region10: #{tpu_custom_call.1} parent=5 // pred_check_branch
        %175 = sbr.rel (%p172) target = $region12
      $region11: #{tpu_custom_call.1} parent=5 // pred_region
        %s176 = ssub.s32 %s17, 1
        // Predicated region
        $region13: #{tpu_custom_call.1} parent=11 // pred_check
          %p177 = pneg %p78
        $region14: #{tpu_custom_call.1} parent=11 // pred_check_branch
          %179 = sbr.rel (%p177) target = $region16
        $region15: #{tpu_custom_call.1} parent=11 // pred_region
          _
        $region16: #{tpu_custom_call.1} parent=11 // pred_fallthru
          _
      $region12: #{tpu_custom_call.1} parent=5 // pred_fallthru
        _
      %p180 = scmp.lt.s32.totalorder %s17, 2
      // Predicated region
      $region17: #{tpu_custom_call.1} parent=5 // pred_check
        %p181 = pneg %p180
      $region18: #{tpu_custom_call.1} parent=5 // pred_check_branch
        %183 = sbr.rel (%p181) target = $region20
      $region19: #{tpu_custom_call.1} parent=5 // pred_region
        // Predicated region
        $region21: #{tpu_custom_call.1} parent=19 // pred_check
          %p184 = pneg %p51
        $region22: #{tpu_custom_call.1} parent=19 // pred_check_branch
          %186 = sbr.rel (%p184) target = $region24
        $region23: #{tpu_custom_call.1} parent=19 // pred_region
          %s187 = smul.u32 32, %s25
          %p188 = scmp.lt.s32.totalorder %s24, 1
          %s189 = scalar_select %p188, %s24, 1
          %p190 = scmp.lt.s32.totalorder %s187, 31
          %s191 = scalar_select %p190, %s187, 31
          %s192 = smul.addr %s189, 32
          %s193 = sadd.s32 %s191, %s192
          %s194 = smul.addr %s193, 4
          %s195 = scalar_lea.vmem %s0, %s194
          %s196 = smul.u32 32, %s25
        $region24: #{tpu_custom_call.1} parent=19 // pred_fallthru
          _
      $region20: #{tpu_custom_call.1} parent=5 // pred_fallthru
        _
      %p197 = scmp.le.s32.totalorder 1, %s17
      %p198 = scmp.lt.s32.totalorder %s17, 3
      %p199 = pnand %p197, %p198
      %p200 = pneg %p199
      // Predicated region
      $region25: #{tpu_custom_call.1} parent=5 // pred_check
        _
      $region26: #{tpu_custom_call.1} parent=5 // pred_check_branch
        %202 = sbr.rel (%p199) target = $region28
      $region27: #{tpu_custom_call.1} parent=5 // pred_region
        %s203 = ssub.s32 %s17, 1
        %s204 = smul.u32 32, %s27
        %p205 = scmp.lt.s32.totalorder %s26, 1
        %s206 = scalar_select %p205, %s26, 1
        %p207 = scmp.lt.s32.totalorder %s204, 31
        %s208 = scalar_select %p207, %s204, 31
        %s209 = smul.addr %s206, 32
        %s210 = sadd.s32 %s208, %s209
        %s211 = smul.addr %s210, 4
        %s212 = scalar_lea.vmem %s0, %s211
        %p213 = pneg %p57
        %p214 = pneg %p54
        %p215 = pneg %p78
        %p216 = pneg %p75
        %p217 = pneg %p106
        %p218 = pneg %p103
        %s219 = smul.u32 32, %s27
        %p220 = scmp.lt.s32.totalorder %s26, 1
        %s221 = scalar_select %p220, %s26, 1
        %p222 = scmp.lt.s32.totalorder %s219, 31
        %s223 = scalar_select %p222, %s219, 31
        %s224 = smul.addr %s221, 32
        %s225 = sadd.s32 %s223, %s224
        %s226 = smul.addr %s225, 4
        %s227 = scalar_lea.vmem %s2, %s226
        %p228 = pneg %p134
        %p229 = pneg %p131
        %s230 = sand.u32 %s121, 1
        %s231 = scalar_lea.sflag [#allocation3], %s230
        %s232 = sand.u32 %s121, 1
        %s233 = scalar_lea.vmem [#allocation2], %s232
        %p234 = pneg %p162
        %p235 = pneg %p159
        %s236 = sand.u32 %s149, 1
        %s237 = scalar_lea.sflag [#allocation5], %s236
        %s238 = sand.u32 %s149, 1
        %s239 = scalar_lea.vmem [#allocation4], %s238
        %s240 = smul.u32 32, %s27
        %p241 = scmp.lt.s32.totalorder %s26, 1
        %s242 = scalar_select %p241, %s26, 1
        %p243 = scmp.lt.s32.totalorder %s240, 31
        %s244 = scalar_select %p243, %s240, 31
        %s245 = smul.addr %s242, 32
        %s246 = sadd.s32 %s244, %s245
        %s247 = smul.addr %s246, 4
        %s248 = scalar_lea.vmem %s0, %s247
        %s249 = smul.u32 32, %s27
        %s250 = smul.u32 32, %s27
        %p251 = scmp.lt.s32.totalorder %s26, 1
        %s252 = scalar_select %p251, %s26, 1
        %p253 = scmp.lt.s32.totalorder %s250, 31
        %s254 = scalar_select %p253, %s250, 31
        %s255 = smul.addr %s252, 32
        %s256 = sadd.s32 %s254, %s255
        %s257 = smul.addr %s256, 4
        %s258 = scalar_lea.vmem %s2, %s257
        %s259 = smul.u32 32, %s27
        %v261 = vld [vmem:[%s248] sm:$0xf]
        %v262 = vld [vmem:[%s248 + $0x4] sm:$0xf]
        %v263 = vld [vmem:[%s248 + $0x8] sm:$0xf]
        %v264 = vld [vmem:[%s248 + $0xc] sm:$0xf]
        %v265 = vld [vmem:[%s248 + $0x10] sm:$0xf]
        %v266 = vld [vmem:[%s248 + $0x14] sm:$0xf]
        %v267 = vld [vmem:[%s248 + $0x18] sm:$0xf]
        %v268 = vld [vmem:[%s248 + $0x1c] sm:$0xf]
        %v269 = vld [vmem:[%s248 + $0x20] sm:$0xf]
        %v270 = vld [vmem:[%s248 + $0x24] sm:$0xf]
        %v271 = vld [vmem:[%s248 + $0x28] sm:$0xf]
        %v272 = vld [vmem:[%s248 + $0x2c] sm:$0xf]
        %v273 = vld [vmem:[%s248 + $0x30] sm:$0xf]
        %v274 = vld [vmem:[%s248 + $0x34] sm:$0xf]
        %v275 = vld [vmem:[%s248 + $0x38] sm:$0xf]
        %v276 = vld [vmem:[%s248 + $0x3c] sm:$0xf]
        %v277 = vld [vmem:[%s248 + $0x40] sm:$0xf]
        %v278 = vld [vmem:[%s248 + $0x44] sm:$0xf]
        %v279 = vld [vmem:[%s248 + $0x48] sm:$0xf]
        %v280 = vld [vmem:[%s248 + $0x4c] sm:$0xf]
        %v281 = vld [vmem:[%s248 + $0x50] sm:$0xf]
        %v282 = vld [vmem:[%s248 + $0x54] sm:$0xf]
        %v283 = vld [vmem:[%s248 + $0x58] sm:$0xf]
        %v284 = vld [vmem:[%s248 + $0x5c] sm:$0xf]
        %v285 = vld [vmem:[%s248 + $0x60] sm:$0xf]
        %v286 = vld [vmem:[%s248 + $0x64] sm:$0xf]
        %v287 = vld [vmem:[%s248 + $0x68] sm:$0xf]
        %v288 = vld [vmem:[%s248 + $0x6c] sm:$0xf]
        %v289 = vld [vmem:[%s248 + $0x70] sm:$0xf]
        %v290 = vld [vmem:[%s248 + $0x74] sm:$0xf]
        %v291 = vld [vmem:[%s248 + $0x78] sm:$0xf]
        %v292 = vld [vmem:[%s248 + $0x7c] sm:$0xf]
        %v293 = vld [vmem:[%s1] sm:$0xf]
        %v294 = vld [vmem:[%s1 + $0x4] sm:$0xf]
        %v295 = vld [vmem:[%s1 + $0x8] sm:$0xf]
        %v296 = vld [vmem:[%s1 + $0xc] sm:$0xf]
        %v297 = vld [vmem:[%s1 + $0x10] sm:$0x3]
        %v330 = vunpack.c.l.b16 %v261
        %v331 = vunpack.c.l.b16 %v262
        %v332 = vunpack.c.l.b16 %v263
        %v333 = vunpack.c.l.b16 %v264
        %v334 = vunpack.c.l.b16 %v265
        %v335 = vunpack.c.l.b16 %v266
        %v336 = vunpack.c.l.b16 %v267
        %v337 = vunpack.c.l.b16 %v268
        %v338 = vunpack.c.l.b16 %v269
        %v339 = vunpack.c.l.b16 %v270
        %v340 = vunpack.c.l.b16 %v271
        %v341 = vunpack.c.l.b16 %v272
        %v342 = vunpack.c.l.b16 %v273
        %v343 = vunpack.c.l.b16 %v274
        %v344 = vunpack.c.l.b16 %v275
        %v345 = vunpack.c.l.b16 %v276
        %v346 = vunpack.c.l.b16 %v277
        %v347 = vunpack.c.l.b16 %v278
        %v348 = vunpack.c.l.b16 %v279
        %v349 = vunpack.c.l.b16 %v280
        %v350 = vunpack.c.l.b16 %v281
        %v351 = vunpack.c.l.b16 %v282
        %v352 = vunpack.c.l.b16 %v283
        %v353 = vunpack.c.l.b16 %v284
        %v354 = vunpack.c.l.b16 %v285
        %v355 = vunpack.c.l.b16 %v286
        %v356 = vunpack.c.l.b16 %v287
        %v357 = vunpack.c.l.b16 %v288
        %v358 = vunpack.c.l.b16 %v289
        %v359 = vunpack.c.l.b16 %v290
        %v360 = vunpack.c.l.b16 %v291
        %v361 = vunpack.c.l.b16 %v292
        %v362 = vpack.c.b16 %v331, %v330
        %v363 = vpack.c.b16 %v333, %v332
        %v364 = vpack.c.b16 %v335, %v334
        %v365 = vpack.c.b16 %v337, %v336
        %v366 = vpack.c.b16 %v339, %v338
        %v367 = vpack.c.b16 %v341, %v340
        %v368 = vpack.c.b16 %v343, %v342
        %v369 = vpack.c.b16 %v345, %v344
        %v370 = vpack.c.b16 %v347, %v346
        %v371 = vpack.c.b16 %v349, %v348
        %v372 = vpack.c.b16 %v351, %v350
        %v373 = vpack.c.b16 %v353, %v352
        %v374 = vpack.c.b16 %v355, %v354
        %v375 = vpack.c.b16 %v357, %v356
        %v376 = vpack.c.b16 %v359, %v358
        %v377 = vpack.c.b16 %v361, %v360
        %v383 = vunpack.c.l.b16 %v293
        %v384 = vunpack.c.l.b16 %v294
        %v385 = vunpack.c.l.b16 %v295
        %v386 = vunpack.c.l.b16 %v296
        %v387 = vunpack.c.l.b16 %v297
        %v388 = vpack.c.b16 %v384, %v383
        %v389 = vpack.c.b16 %v386, %v385
        %v390 = vpack.c.b16 %v387, %v387
        %vm393 = vcmask 293888
        %v395 = vsel %vm393, %v362, 0
        %v398 = vsel %vm393, %v363, 0
        %v401 = vsel %vm393, %v364, 0
        %v404 = vsel %vm393, %v365, 0
        %v407 = vsel %vm393, %v366, 0
        %v410 = vsel %vm393, %v367, 0
        %v413 = vsel %vm393, %v368, 0
        %v416 = vsel %vm393, %v369, 0
        %v419 = vsel %vm393, %v370, 0
        %v422 = vsel %vm393, %v371, 0
        %v425 = vsel %vm393, %v372, 0
        %v428 = vsel %vm393, %v373, 0
        %v431 = vsel %vm393, %v374, 0
        %v434 = vsel %vm393, %v375, 0
        %v437 = vsel %vm393, %v376, 0
        %v440 = vsel %vm393, %v377, 0
        %vm442 = vcmask 1041408
        %v444 = vsel %vm442, %v390, 0
        %446 = vmatpush.bf16.msra.mxu0 0
        %447 = vmatpush.bf16.msra.mxu0 0
        %448 = vmatpush.bf16.msra.mxu0 0
        %449 = vmatpush.bf16.msra.mxu0 0
        %450 = vmatpush.bf16.msra.mxu0 0
        %451 = vmatpush.bf16.msra.mxu0 %v444
        %452 = vmatpush.bf16.msra.mxu0 %v389
        %453 = vmatpush.bf16.msra.mxu0 %v388
        %454 = vmatmul.bf16.gmra.mxu0 %v395
        %v455 = vpop.f32.mrf.mxu0
        %v456 = vadd.f32 0.0, %v455
        %v457 = vpop.f32.mrf.mxu0
        %v458 = vadd.f32 0.0, %v457
        %459 = vmatmul.bf16.gmra.mxu0 %v398
        %v460 = vpop.f32.mrf.mxu0
        %v461 = vadd.f32 0.0, %v460
        %v462 = vpop.f32.mrf.mxu0
        %v463 = vadd.f32 0.0, %v462
        %464 = vmatmul.bf16.gmra.mxu0 %v401
        %v465 = vpop.f32.mrf.mxu0
        %v466 = vadd.f32 0.0, %v465
        %v467 = vpop.f32.mrf.mxu0
        %v468 = vadd.f32 0.0, %v467
        %469 = vmatmul.bf16.gmra.mxu0 %v404
        %v470 = vpop.f32.mrf.mxu0
        %v471 = vadd.f32 0.0, %v470
        %v472 = vpop.f32.mrf.mxu0
        %v473 = vadd.f32 0.0, %v472
        %474 = vmatmul.bf16.gmra.mxu0 %v407
        %v475 = vpop.f32.mrf.mxu0
        %v476 = vadd.f32 0.0, %v475
        %v477 = vpop.f32.mrf.mxu0
        %v478 = vadd.f32 0.0, %v477
        %479 = vmatmul.bf16.gmra.mxu0 %v410
        %v480 = vpop.f32.mrf.mxu0
        %v481 = vadd.f32 0.0, %v480
        %v482 = vpop.f32.mrf.mxu0
        %v483 = vadd.f32 0.0, %v482
        %484 = vmatmul.bf16.gmra.mxu0 %v413
        %v485 = vpop.f32.mrf.mxu0
        %v486 = vadd.f32 0.0, %v485
        %v487 = vpop.f32.mrf.mxu0
        %v488 = vadd.f32 0.0, %v487
        %489 = vmatmul.bf16.gmra.mxu0 %v416
        %v490 = vpop.f32.mrf.mxu0
        %v491 = vadd.f32 0.0, %v490
        %v492 = vpop.f32.mrf.mxu0
        %v493 = vadd.f32 0.0, %v492
        %494 = vmatmul.bf16.gmra.mxu0 %v419
        %v495 = vpop.f32.mrf.mxu0
        %v496 = vadd.f32 0.0, %v495
        %v497 = vpop.f32.mrf.mxu0
        %v498 = vadd.f32 0.0, %v497
        %499 = vmatmul.bf16.gmra.mxu0 %v422
        %v500 = vpop.f32.mrf.mxu0
        %v501 = vadd.f32 0.0, %v500
        %v502 = vpop.f32.mrf.mxu0
        %v503 = vadd.f32 0.0, %v502
        %504 = vmatmul.bf16.gmra.mxu0 %v425
        %v505 = vpop.f32.mrf.mxu0
        %v506 = vadd.f32 0.0, %v505
        %v507 = vpop.f32.mrf.mxu0
        %v508 = vadd.f32 0.0, %v507
        %509 = vmatmul.bf16.gmra.mxu0 %v428
        %v510 = vpop.f32.mrf.mxu0
        %v511 = vadd.f32 0.0, %v510
        %v512 = vpop.f32.mrf.mxu0
        %v513 = vadd.f32 0.0, %v512
        %514 = vmatmul.bf16.gmra.mxu0 %v431
        %v515 = vpop.f32.mrf.mxu0
        %v516 = vadd.f32 0.0, %v515
        %v517 = vpop.f32.mrf.mxu0
        %v518 = vadd.f32 0.0, %v517
        %519 = vmatmul.bf16.gmra.mxu0 %v434
        %v520 = vpop.f32.mrf.mxu0
        %v521 = vadd.f32 0.0, %v520
        %v522 = vpop.f32.mrf.mxu0
        %v523 = vadd.f32 0.0, %v522
        %524 = vmatmul.bf16.gmra.mxu0 %v437
        %v525 = vpop.f32.mrf.mxu0
        %v526 = vadd.f32 0.0, %v525
        %v527 = vpop.f32.mrf.mxu0
        %v528 = vadd.f32 0.0, %v527
        %529 = vmatmul.bf16.gmra.mxu0 %v440
        %v530 = vpop.f32.mrf.mxu0
        %v531 = vadd.f32 0.0, %v530
        %v532 = vpop.f32.mrf.mxu0
        %v533 = vadd.f32 0.0, %v532
        %534 = vdwg.mxu0
        %v535 = vpack.c.bf16 %v456, %v456
        %v536 = vpack.c.bf16 %v458, %v458
        %v537 = vpack.c.bf16 %v461, %v461
        %v538 = vpack.c.bf16 %v463, %v463
        %v539 = vpack.c.bf16 %v466, %v466
        %v540 = vpack.c.bf16 %v468, %v468
        %v541 = vpack.c.bf16 %v471, %v471
        %v542 = vpack.c.bf16 %v473, %v473
        %v543 = vpack.c.bf16 %v476, %v476
        %v544 = vpack.c.bf16 %v478, %v478
        %v545 = vpack.c.bf16 %v481, %v481
        %v546 = vpack.c.bf16 %v483, %v483
        %v547 = vpack.c.bf16 %v486, %v486
        %v548 = vpack.c.bf16 %v488, %v488
        %v549 = vpack.c.bf16 %v491, %v491
        %v550 = vpack.c.bf16 %v493, %v493
        %v551 = vpack.c.bf16 %v496, %v496
        %v552 = vpack.c.bf16 %v498, %v498
        %v553 = vpack.c.bf16 %v501, %v501
        %v554 = vpack.c.bf16 %v503, %v503
        %v555 = vpack.c.bf16 %v506, %v506
        %v556 = vpack.c.bf16 %v508, %v508
        %v557 = vpack.c.bf16 %v511, %v511
        %v558 = vpack.c.bf16 %v513, %v513
        %v559 = vpack.c.bf16 %v516, %v516
        %v560 = vpack.c.bf16 %v518, %v518
        %v561 = vpack.c.bf16 %v521, %v521
        %v562 = vpack.c.bf16 %v523, %v523
        %v563 = vpack.c.bf16 %v526, %v526
        %v564 = vpack.c.bf16 %v528, %v528
        %v565 = vpack.c.bf16 %v531, %v531
        %v566 = vpack.c.bf16 %v533, %v533
        %vm567 = vcmask 60416
        %568 = vst.msk [vmem:[%s258] sm:$0xf] %vm567, %v535
        %569 = vst.msk [vmem:[%s258 + $0x4] sm:$0xf] %vm567, %v536
        %570 = vst.msk [vmem:[%s258 + $0x8] sm:$0xf] %vm567, %v537
        %571 = vst.msk [vmem:[%s258 + $0xc] sm:$0xf] %vm567, %v538
        %572 = vst.msk [vmem:[%s258 + $0x10] sm:$0xf] %vm567, %v539
        %573 = vst.msk [vmem:[%s258 + $0x14] sm:$0xf] %vm567, %v540
        %574 = vst.msk [vmem:[%s258 + $0x18] sm:$0xf] %vm567, %v541
        %575 = vst.msk [vmem:[%s258 + $0x1c] sm:$0xf] %vm567, %v542
        %576 = vst.msk [vmem:[%s258 + $0x20] sm:$0xf] %vm567, %v543
        %577 = vst.msk [vmem:[%s258 + $0x24] sm:$0xf] %vm567, %v544
        %578 = vst.msk [vmem:[%s258 + $0x28] sm:$0xf] %vm567, %v545
        %579 = vst.msk [vmem:[%s258 + $0x2c] sm:$0xf] %vm567, %v546
        %580 = vst.msk [vmem:[%s258 + $0x30] sm:$0xf] %vm567, %v547
        %581 = vst.msk [vmem:[%s258 + $0x34] sm:$0xf] %vm567, %v548
        %582 = vst.msk [vmem:[%s258 + $0x38] sm:$0xf] %vm567, %v549
        %583 = vst.msk [vmem:[%s258 + $0x3c] sm:$0xf] %vm567, %v550
        %584 = vst.msk [vmem:[%s258 + $0x40] sm:$0xf] %vm567, %v551
        %585 = vst.msk [vmem:[%s258 + $0x44] sm:$0xf] %vm567, %v552
        %586 = vst.msk [vmem:[%s258 + $0x48] sm:$0xf] %vm567, %v553
        %587 = vst.msk [vmem:[%s258 + $0x4c] sm:$0xf] %vm567, %v554
        %588 = vst.msk [vmem:[%s258 + $0x50] sm:$0xf] %vm567, %v555
        %589 = vst.msk [vmem:[%s258 + $0x54] sm:$0xf] %vm567, %v556
        %590 = vst.msk [vmem:[%s258 + $0x58] sm:$0xf] %vm567, %v557
        %591 = vst.msk [vmem:[%s258 + $0x5c] sm:$0xf] %vm567, %v558
        %592 = vst.msk [vmem:[%s258 + $0x60] sm:$0xf] %vm567, %v559
        %593 = vst.msk [vmem:[%s258 + $0x64] sm:$0xf] %vm567, %v560
        %594 = vst.msk [vmem:[%s258 + $0x68] sm:$0xf] %vm567, %v561
        %595 = vst.msk [vmem:[%s258 + $0x6c] sm:$0xf] %vm567, %v562
        %596 = vst.msk [vmem:[%s258 + $0x70] sm:$0xf] %vm567, %v563
        %597 = vst.msk [vmem:[%s258 + $0x74] sm:$0xf] %vm567, %v564
        %598 = vst.msk [vmem:[%s258 + $0x78] sm:$0xf] %vm567, %v565
        %599 = vst.msk [vmem:[%s258 + $0x7c] sm:$0xf] %vm567, %v566
        %v600 = vunpack.c.l.bf16 %v535
        %v601 = vunpack.c.l.bf16 %v536
        %v602 = vunpack.c.l.bf16 %v537
        %v603 = vunpack.c.l.bf16 %v538
        %v604 = vunpack.c.l.bf16 %v539
        %v605 = vunpack.c.l.bf16 %v540
        %v606 = vunpack.c.l.bf16 %v541
        %v607 = vunpack.c.l.bf16 %v542
        %v608 = vunpack.c.l.bf16 %v543
        %v609 = vunpack.c.l.bf16 %v544
        %v610 = vunpack.c.l.bf16 %v545
        %v611 = vunpack.c.l.bf16 %v546
        %v612 = vunpack.c.l.bf16 %v547
        %v613 = vunpack.c.l.bf16 %v548
        %v614 = vunpack.c.l.bf16 %v549
        %v615 = vunpack.c.l.bf16 %v550
        %v616 = vunpack.c.l.bf16 %v551
        %v617 = vunpack.c.l.bf16 %v552
        %v618 = vunpack.c.l.bf16 %v553
        %v619 = vunpack.c.l.bf16 %v554
        %v620 = vunpack.c.l.bf16 %v555
        %v621 = vunpack.c.l.bf16 %v556
        %v622 = vunpack.c.l.bf16 %v557
        %v623 = vunpack.c.l.bf16 %v558
        %v624 = vunpack.c.l.bf16 %v559
        %v625 = vunpack.c.l.bf16 %v560
        %v626 = vunpack.c.l.bf16 %v561
        %v627 = vunpack.c.l.bf16 %v562
        %v628 = vunpack.c.l.bf16 %v563
        %v629 = vunpack.c.l.bf16 %v564
        %v630 = vunpack.c.l.bf16 %v565
        %v631 = vunpack.c.l.bf16 %v566
        %vm632 = vcmask 64512
        %v633 = vsel %vm632, %v600, 0.0
        %v634 = vsel %vm632, %v601, 0.0
        %v635 = vadd.f32 %v633, %v634
        %v636 = vsel %vm632, %v602, 0.0
        %v637 = vadd.f32 %v635, %v636
        %v638 = vsel %vm632, %v603, 0.0
        %v639 = vadd.f32 %v637, %v638
        %v640 = vsel %vm632, %v604, 0.0
        %v641 = vadd.f32 %v639, %v640
        %v642 = vsel %vm632, %v605, 0.0
        %v643 = vadd.f32 %v641, %v642
        %v644 = vsel %vm632, %v606, 0.0
        %v645 = vadd.f32 %v643, %v644
        %v646 = vsel %vm632, %v607, 0.0
        %v647 = vadd.f32 %v645, %v646
        %v648 = vsel %vm632, %v608, 0.0
        %v649 = vadd.f32 %v647, %v648
        %v650 = vsel %vm632, %v609, 0.0
        %v651 = vadd.f32 %v649, %v650
        %v652 = vsel %vm632, %v610, 0.0
        %v653 = vadd.f32 %v651, %v652
        %v654 = vsel %vm632, %v611, 0.0
        %v655 = vadd.f32 %v653, %v654
        %v656 = vsel %vm632, %v612, 0.0
        %v657 = vadd.f32 %v655, %v656
        %v658 = vsel %vm632, %v613, 0.0
        %v659 = vadd.f32 %v657, %v658
        %v660 = vsel %vm632, %v614, 0.0
        %v661 = vadd.f32 %v659, %v660
        %v662 = vsel %vm632, %v615, 0.0
        %v663 = vadd.f32 %v661, %v662
        %v664 = vsel %vm632, %v616, 0.0
        %v665 = vadd.f32 %v663, %v664
        %v666 = vsel %vm632, %v617, 0.0
        %v667 = vadd.f32 %v665, %v666
        %v668 = vsel %vm632, %v618, 0.0
        %v669 = vadd.f32 %v667, %v668
        %v670 = vsel %vm632, %v619, 0.0
        %v671 = vadd.f32 %v669, %v670
        %v672 = vsel %vm632, %v620, 0.0
        %v673 = vadd.f32 %v671, %v672
        %v674 = vsel %vm632, %v621, 0.0
        %v675 = vadd.f32 %v673, %v674
        %v676 = vsel %vm632, %v622, 0.0
        %v677 = vadd.f32 %v675, %v676
        %v678 = vsel %vm632, %v623, 0.0
        %v679 = vadd.f32 %v677, %v678
        %v680 = vsel %vm632, %v624, 0.0
        %v681 = vadd.f32 %v679, %v680
        %v682 = vsel %vm632, %v625, 0.0
        %v683 = vadd.f32 %v681, %v682
        %v684 = vsel %vm632, %v626, 0.0
        %v685 = vadd.f32 %v683, %v684
        %v686 = vsel %vm632, %v627, 0.0
        %v687 = vadd.f32 %v685, %v686
        %v688 = vsel %vm632, %v628, 0.0
        %v689 = vadd.f32 %v687, %v688
        %v690 = vsel %vm632, %v629, 0.0
        %v691 = vadd.f32 %v689, %v690
        %v692 = vsel %vm632, %v630, 0.0
        %v693 = vadd.f32 %v691, %v692
        %v694 = vsel %vm632, %v631, 0.0
        %v695 = vadd.f32 %v693, %v694
        %v696 = vrot.slane %v695, 4
        %v697 = vadd.f32 %v695, %v696
        %v698 = vrot.slane %v697, 2
        %v699 = vadd.f32 %v697, %v698
        %v700 = vrot.slane %v699, 1
        %v701 = vadd.f32 %v699, %v700
        %vm702 = vcmask 57344
        %703 = vst.msk [vmem:[%s233] sm:$0x1] %vm702, %v701
        %v704 = vmul.f32 %v600, %v600
        %v705 = vmul.f32 %v601, %v601
        %v706 = vmul.f32 %v602, %v602
        %v707 = vmul.f32 %v603, %v603
        %v708 = vmul.f32 %v604, %v604
        %v709 = vmul.f32 %v605, %v605
        %v710 = vmul.f32 %v606, %v606
        %v711 = vmul.f32 %v607, %v607
        %v712 = vmul.f32 %v608, %v608
        %v713 = vmul.f32 %v609, %v609
        %v714 = vmul.f32 %v610, %v610
        %v715 = vmul.f32 %v611, %v611
        %v716 = vmul.f32 %v612, %v612
        %v717 = vmul.f32 %v613, %v613
        %v718 = vmul.f32 %v614, %v614
        %v719 = vmul.f32 %v615, %v615
        %v720 = vmul.f32 %v616, %v616
        %v721 = vmul.f32 %v617, %v617
        %v722 = vmul.f32 %v618, %v618
        %v723 = vmul.f32 %v619, %v619
        %v724 = vmul.f32 %v620, %v620
        %v725 = vmul.f32 %v621, %v621
        %v726 = vmul.f32 %v622, %v622
        %v727 = vmul.f32 %v623, %v623
        %v728 = vmul.f32 %v624, %v624
        %v729 = vmul.f32 %v625, %v625
        %v730 = vmul.f32 %v626, %v626
        %v731 = vmul.f32 %v627, %v627
        %v732 = vmul.f32 %v628, %v628
        %v733 = vmul.f32 %v629, %v629
        %v734 = vmul.f32 %v630, %v630
        %v735 = vmul.f32 %v631, %v631
        %v736 = vsel %vm632, %v704, 0.0
        %v737 = vsel %vm632, %v705, 0.0
        %v738 = vadd.f32 %v736, %v737
        %v739 = vsel %vm632, %v706, 0.0
        %v740 = vadd.f32 %v738, %v739
        %v741 = vsel %vm632, %v707, 0.0
        %v742 = vadd.f32 %v740, %v741
        %v743 = vsel %vm632, %v708, 0.0
        %v744 = vadd.f32 %v742, %v743
        %v745 = vsel %vm632, %v709, 0.0
        %v746 = vadd.f32 %v744, %v745
        %v747 = vsel %vm632, %v710, 0.0
        %v748 = vadd.f32 %v746, %v747
        %v749 = vsel %vm632, %v711, 0.0
        %v750 = vadd.f32 %v748, %v749
        %v751 = vsel %vm632, %v712, 0.0
        %v752 = vadd.f32 %v750, %v751
        %v753 = vsel %vm632, %v713, 0.0
        %v754 = vadd.f32 %v752, %v753
        %v755 = vsel %vm632, %v714, 0.0
        %v756 = vadd.f32 %v754, %v755
        %v757 = vsel %vm632, %v715, 0.0
        %v758 = vadd.f32 %v756, %v757
        %v759 = vsel %vm632, %v716, 0.0
        %v760 = vadd.f32 %v758, %v759
        %v761 = vsel %vm632, %v717, 0.0
        %v762 = vadd.f32 %v760, %v761
        %v763 = vsel %vm632, %v718, 0.0
        %v764 = vadd.f32 %v762, %v763
        %v765 = vsel %vm632, %v719, 0.0
        %v766 = vadd.f32 %v764, %v765
        %v767 = vsel %vm632, %v720, 0.0
        %v768 = vadd.f32 %v766, %v767
        %v769 = vsel %vm632, %v721, 0.0
        %v770 = vadd.f32 %v768, %v769
        %v771 = vsel %vm632, %v722, 0.0
        %v772 = vadd.f32 %v770, %v771
        %v773 = vsel %vm632, %v723, 0.0
        %v774 = vadd.f32 %v772, %v773
        %v775 = vsel %vm632, %v724, 0.0
        %v776 = vadd.f32 %v774, %v775
        %v777 = vsel %vm632, %v725, 0.0
        %v778 = vadd.f32 %v776, %v777
        %v779 = vsel %vm632, %v726, 0.0
        %v780 = vadd.f32 %v778, %v779
        %v781 = vsel %vm632, %v727, 0.0
        %v782 = vadd.f32 %v780, %v781
        %v783 = vsel %vm632, %v728, 0.0
        %v784 = vadd.f32 %v782, %v783
        %v785 = vsel %vm632, %v729, 0.0
        %v786 = vadd.f32 %v784, %v785
        %v787 = vsel %vm632, %v730, 0.0
        %v788 = vadd.f32 %v786, %v787
        %v789 = vsel %vm632, %v731, 0.0
        %v790 = vadd.f32 %v788, %v789
        %v791 = vsel %vm632, %v732, 0.0
        %v792 = vadd.f32 %v790, %v791
        %v793 = vsel %vm632, %v733, 0.0
        %v794 = vadd.f32 %v792, %v793
        %v795 = vsel %vm632, %v734, 0.0
        %v796 = vadd.f32 %v794, %v795
        %v797 = vsel %vm632, %v735, 0.0
        %v798 = vadd.f32 %v796, %v797
        %v799 = vrot.slane %v798, 4
        %v800 = vadd.f32 %v798, %v799
        %v801 = vrot.slane %v800, 2
        %v802 = vadd.f32 %v800, %v801
        %v803 = vrot.slane %v802, 1
        %v804 = vadd.f32 %v802, %v803
        %805 = vst.msk [vmem:[%s239] sm:$0x1] %vm702, %v804
        %s806 = smul.u32 32, %s27
        %p807 = scmp.lt.s32.totalorder %s26, 1
        %s808 = scalar_select %p807, %s26, 1
        %p809 = scmp.lt.s32.totalorder %s806, 31
        %s810 = scalar_select %p809, %s806, 31
        %s811 = smul.addr %s808, 32
        %s812 = sadd.s32 %s810, %s811
        %s813 = smul.addr %s812, 4
        %s814 = scalar_lea.vmem %s2, %s813
        %s815 = sand.u32 %s121, 1
        %s816 = scalar_lea.sflag [#allocation3], %s815
        %s817 = sand.u32 %s121, 1
        %s818 = scalar_lea.vmem [#allocation2], %s817
        %s819 = sand.u32 %s149, 1
        %s820 = scalar_lea.sflag [#allocation5], %s819
        %s821 = sand.u32 %s149, 1
        %s822 = scalar_lea.vmem [#allocation4], %s821
        // Predicated region
        $region29: #{tpu_custom_call.1} parent=27 // pred_check
          %p823 = pneg %p103
        $region30: #{tpu_custom_call.1} parent=27 // pred_check_branch
          %825 = sbr.rel (%p823) target = $region32
        $region31: #{tpu_custom_call.1} parent=27 // pred_region
          %s826 = smul.u32 32, %s27
        $region32: #{tpu_custom_call.1} parent=27 // pred_fallthru
          _
        // Predicated region
        $region33: #{tpu_custom_call.1} parent=27 // pred_check
          %p827 = pneg %p131
        $region34: #{tpu_custom_call.1} parent=27 // pred_check_branch
          %829 = sbr.rel (%p827) target = $region36
        $region35: #{tpu_custom_call.1} parent=27 // pred_region
          %831 = vsyncadd %s816, 0
          %s832 = sadd.s32 %s27, %s26
          %s833 = scalar_lea.hbm %s3, %s832
          %s835 = sshll.u32 %s818, 4
          %s836 = int_to_ptr.vmem [resolvable:$true] %s835
          %s837 = sshll.u32 %s833, 4
          %s838 = int_to_ptr.hbm [resolvable:$true] %s837
          %840 = dma.vmem_to_hbm [thread:$0]  %s836, 16, %s838, %s816
        $region36: #{tpu_custom_call.1} parent=27 // pred_fallthru
          _
        // Predicated region
        $region37: #{tpu_custom_call.1} parent=27 // pred_check
          %p841 = pneg %p159
        $region38: #{tpu_custom_call.1} parent=27 // pred_check_branch
          %843 = sbr.rel (%p841) target = $region40
        $region39: #{tpu_custom_call.1} parent=27 // pred_region
          %845 = vsyncadd %s820, 0
          %s846 = sadd.s32 %s27, %s26
          %s847 = scalar_lea.hbm %s4, %s846
          %s849 = sshll.u32 %s822, 4
          %s850 = int_to_ptr.vmem [resolvable:$true] %s849
          %s851 = sshll.u32 %s847, 4
          %s852 = int_to_ptr.hbm [resolvable:$true] %s851
          %854 = dma.vmem_to_hbm [thread:$0]  %s850, 16, %s852, %s820
        $region40: #{tpu_custom_call.1} parent=27 // pred_fallthru
          _
      $region28: #{tpu_custom_call.1} parent=5 // pred_fallthru
        _
      %p855 = scmp.le.s32.totalorder 2, %s17
      // Predicated region
      $region41: #{tpu_custom_call.1} parent=5 // pred_check
        %p856 = pneg %p855
      $region42: #{tpu_custom_call.1} parent=5 // pred_check_branch
        %858 = sbr.rel (%p856) target = $region44
      $region43: #{tpu_custom_call.1} parent=5 // pred_region
        %s859 = ssub.s32 %s17, 2
        // Predicated region
        $region45: #{tpu_custom_call.1} parent=43 // pred_check
          %p860 = pneg %p109
        $region46: #{tpu_custom_call.1} parent=43 // pred_check_branch
          %862 = sbr.rel (%p860) target = $region48
        $region47: #{tpu_custom_call.1} parent=43 // pred_region
          %s863 = smul.u32 32, %s29
          %p864 = scmp.lt.s32.totalorder %s28, 1
          %s865 = scalar_select %p864, %s28, 1
          %p866 = scmp.lt.s32.totalorder %s863, 31
          %s867 = scalar_select %p866, %s863, 31
          %s868 = smul.addr %s865, 32
          %s869 = sadd.s32 %s867, %s868
          %s870 = smul.addr %s869, 4
          %s871 = scalar_lea.vmem %s2, %s870
        $region48: #{tpu_custom_call.1} parent=43 // pred_fallthru
          _
        // Predicated region
        $region49: #{tpu_custom_call.1} parent=43 // pred_check
          %p872 = pneg %p137
        $region50: #{tpu_custom_call.1} parent=43 // pred_check_branch
          %874 = sbr.rel (%p872) target = $region52
        $region51: #{tpu_custom_call.1} parent=43 // pred_region
          %s875 = sand.u32 %s122, 1
          %s876 = scalar_lea.sflag [#allocation3], %s875
          %s877 = sand.u32 %s122, 1
          %s878 = scalar_lea.vmem [#allocation2], %s877
          %880 = dma.done %s876, 16
        $region52: #{tpu_custom_call.1} parent=43 // pred_fallthru
          _
        // Predicated region
        $region53: #{tpu_custom_call.1} parent=43 // pred_check
          %p881 = pneg %p165
        $region54: #{tpu_custom_call.1} parent=43 // pred_check_branch
          %883 = sbr.rel (%p881) target = $region56
        $region55: #{tpu_custom_call.1} parent=43 // pred_region
          %s884 = sand.u32 %s150, 1
          %s885 = scalar_lea.sflag [#allocation5], %s884
          %s886 = sand.u32 %s150, 1
          %s887 = scalar_lea.vmem [#allocation4], %s886
          %889 = dma.done %s885, 16
        $region56: #{tpu_custom_call.1} parent=43 // pred_fallthru
          _
      $region44: #{tpu_custom_call.1} parent=5 // pred_fallthru
        _
    $region6: #{tpu_custom_call.1} parent=1 // loop_footer
      %s21 = sadd.s32 1, %s17
    $region7: #{tpu_custom_call.1} parent=1 // loop_footer_branch
      %16 = sbr.rel target = $region3
    $region8: #{tpu_custom_call.1} parent=1 // loop_exit
      _
    %890 = vsyncpa [#allocation3], 1
    %s891 = scalar_lea.sflag [#allocation3], 1
    %892 = vsyncpa %s891, 1
    %893 = vsyncpa [#allocation5], 1
    %s894 = scalar_lea.sflag [#allocation5], 1
    %895 = vsyncpa %s894, 1

</llo_original>
